<compile_context>
chip_gen: v7x
topology: tpu7x:2x2x1
jax: 0.10.0
libtpu: 0.0.40
codegen_flags: <defaults>
</compile_context>

<pallas_src>
import jax
import jax.numpy as jnp
from jax.experimental import pallas as pl
from jax.experimental.pallas import tpu as pltpu


def _round_up(x, m):
    return ((x + m - 1) // m) * m


def _pad_to(a, shape):
    pads = [(0, s - d) for d, s in zip(a.shape, shape)]
    return jnp.pad(a, pads)


def dan_kernel(idx_ref, emb_ref, w1_ref, b1_ref, w2_ref, b2_ref,
               w3_ref, b3_ref, out_ref):
    b_tile, seq = idx_ref.shape
    v_pad = emb_ref.shape[0]
    inv_s = jnp.float32(1.0 / seq)

    idx = idx_ref[...]                                            # (b_tile, S) int32
    vocab_iota = jax.lax.broadcasted_iota(jnp.int32, (b_tile, v_pad), 1)

    # Weighted token counts with the 1/S mean folded in:
    #   counts[b, v] = (1/S) * #{t : idx[b, t] == v}
    # Accumulated one token at a time on a (b_tile, v_pad) tile: S tiny VPU
    # compare/select/add ops, no (B, S, V) tensor, no cross-sublane reduction.
    counts = jnp.zeros((b_tile, v_pad), jnp.float32)
    for t in range(seq):                                          # S is small & static
        tok = idx[:, t:t + 1]                                     # (b_tile, 1) static slice
        counts = counts + jnp.where(vocab_iota == tok, inv_s, jnp.float32(0.0))

    # Mean embedding via the MXU: (b_tile, V_pad) @ (V_pad, E_pad).
    avg = jnp.dot(counts, emb_ref[...], preferred_element_type=jnp.float32)

    # 3-layer MLP (weights are (in, out); biases are (1, out) and broadcast).
    h1 = jnp.dot(avg, w1_ref[...], preferred_element_type=jnp.float32) + b1_ref[...]
    h1 = jnp.maximum(h1, 0.0)
    h2 = jnp.dot(h1, w2_ref[...], preferred_element_type=jnp.float32) + b2_ref[...]
    h2 = jnp.maximum(h2, 0.0)
    logits = jnp.dot(h2, w3_ref[...], preferred_element_type=jnp.float32) + b3_ref[...]

    # sigmoid(x) = 1 / (1 + exp(-x)): exp and approx reciprocal both go to the
    # EUP slot, keeping the VALU free.  Lane-dense (b_tile, 128) store.
    out_ref[...] = pl.reciprocal(1.0 + jnp.exp(-logits), approx=True)


def nn3dan_forward(x_ids, emb_table, w1, b1, w2, b2, w3, b3):
    """x_ids: (B, S) integer token ids. Returns (B, 2) float32."""
    x_ids = x_ids.astype(jnp.int32)          # mirrors x.long()
    B, S = x_ids.shape
    V, E = emb_table.shape
    H = w1.shape[1]
    OUT = w3.shape[1]

    b1 = jnp.reshape(b1, (1, -1)).astype(jnp.float32)
    b2 = jnp.reshape(b2, (1, -1)).astype(jnp.float32)
    b3 = jnp.reshape(b3, (1, -1)).astype(jnp.float32)

    # Pad every matmul dimension to a multiple of 128 (zero padding is exact:
    # padded vocab rows are never counted, padded hidden units stay 0 through
    # relu, padded output columns are sliced off below).
    V_P = _round_up(V, 128)
    E_P = _round_up(E, 128)
    H_P = _round_up(H, 128)
    OUT_P = _round_up(OUT, 128)

    # Batch tile: at least 8 sublanes, at most 128 rows per grid step.
    B_TILE = min(128, _round_up(B, 8))
    B_P = _round_up(B, B_TILE)

    emb_p = _pad_to(emb_table.astype(jnp.float32), (V_P, E_P))
    w1_p = _pad_to(w1.astype(jnp.float32), (E_P, H_P))
    b1_p = _pad_to(b1, (1, H_P))
    w2_p = _pad_to(w2.astype(jnp.float32), (H_P, H_P))
    b2_p = _pad_to(b2, (1, H_P))
    w3_p = _pad_to(w3.astype(jnp.float32), (H_P, OUT_P))
    b3_p = _pad_to(b3, (1, OUT_P))
    x_p = _pad_to(x_ids, (B_P, S))            # padded rows (token 0) sliced off

    inv = lambda i: (0, 0)                    # grid-invariant blocks

    out_p = pl.pallas_call(
        dan_kernel,
        out_shape=jax.ShapeDtypeStruct((B_P, OUT_P), jnp.float32),
        grid_spec=pltpu.PrefetchScalarGridSpec(
            num_scalar_prefetch=0,
            grid=(B_P // B_TILE,),
            in_specs=[
                pl.BlockSpec((B_TILE, S), lambda i: (i, 0)),   # token ids
                pl.BlockSpec((V_P, E_P), inv),                 # embedding table
                pl.BlockSpec((E_P, H_P), inv),                 # W1
                pl.BlockSpec((1, H_P), inv),                   # b1
                pl.BlockSpec((H_P, H_P), inv),                 # W2
                pl.BlockSpec((1, H_P), inv),                   # b2
                pl.BlockSpec((H_P, OUT_P), inv),               # W3
                pl.BlockSpec((1, OUT_P), inv),                 # b3
            ],
            out_specs=pl.BlockSpec((B_TILE, OUT_P), lambda i: (i, 0)),
        ),
        compiler_params=pltpu.CompilerParams(
            dimension_semantics=("parallel",),                 # megacore on v7x
        ),
    )(x_p, emb_p, w1_p, b1_p, w2_p, b2_p, w3_p, b3_p)

    return out_p[:B, :OUT]


def reference_forward(x_ids, emb_table, w1, b1, w2, b2, w3, b3):
    emb = emb_table[x_ids.astype(jnp.int32)]          # (B, S, 300)
    avg = jnp.mean(emb, axis=1)                       # (B, 300)
    h1 = jax.nn.relu(avg @ w1 + b1)
    h2 = jax.nn.relu(h1 @ w2 + b2)
    return jax.nn.sigmoid(h2 @ w3 + b3)


if __name__ == "__main__":
    # Small, deterministic configuration consistent with the module:
    #   vocab_size=64, embedding_dim=300 (fixed by nn.Embedding(vocab, 300)),
    #   index_to_embedding=300 (fc1 input), hidden_size=32, batch=2, seq=8.
    V, E, H, B, S = 64, 300, 32, 2, 8

    key = jax.random.PRNGKey(0)
    k_emb, k_w1, k_b1, k_w2, k_b2, k_w3, k_b3, k_x = jax.random.split(key, 8)

    emb_table = jax.random.normal(k_emb, (V, E), dtype=jnp.float32) * 0.1
    w1 = jax.random.normal(k_w1, (E, H), dtype=jnp.float32) * 0.05   # (in, out)
    b1 = jax.random.normal(k_b1, (1, H), dtype=jnp.float32) * 0.05
    w2 = jax.random.normal(k_w2, (H, H), dtype=jnp.float32) * 0.05
    b2 = jax.random.normal(k_b2, (1, H), dtype=jnp.float32) * 0.05
    w3 = jax.random.normal(k_w3, (H, 2), dtype=jnp.float32) * 0.05
    b3 = jax.random.normal(k_b3, (1, 2), dtype=jnp.float32) * 0.05

    x_ids = jax.random.randint(k_x, (B, S), 0, V, dtype=jnp.int32)

    out = nn3dan_forward(x_ids, emb_table, w1, b1, w2, b2, w3, b3)
    out = jax.block_until_ready(out)

    ref = reference_forward(x_ids, emb_table, w1, b1, w2, b2, w3, b3)
    assert out.shape == (B, 2), out.shape
    # Tolerance covers the EUP approx-reciprocal in the sigmoid (~1e-4 abs).
    assert jnp.allclose(out, ref, atol=1e-3, rtol=1e-3), (out, ref)

    print("KERNEL_OK")
</pallas_src>

<mosaic_0001>
module attributes {stable_mosaic.version = 11 : i64} {
  func.func @dan_kernel(%arg0: i32, %arg1: memref<8x8xi32, #tpu.memory_space<vmem>>, %arg2: memref<128x384xf32, #tpu.memory_space<vmem>>, %arg3: memref<384x128xf32, #tpu.memory_space<vmem>>, %arg4: memref<1x128xf32, #tpu.memory_space<vmem>>, %arg5: memref<128x128xf32, #tpu.memory_space<vmem>>, %arg6: memref<1x128xf32, #tpu.memory_space<vmem>>, %arg7: memref<128x128xf32, #tpu.memory_space<vmem>>, %arg8: memref<1x128xf32, #tpu.memory_space<vmem>>, %arg9: memref<8x128xf32, #tpu.memory_space<vmem>>) attributes {dimension_semantics = [#tpu.dimension_semantics<parallel>], iteration_bounds = array<i64: 1>, scalar_prefetch = 0 : i64, scratch_operands = 0 : i64, tpu.core_type = #tpu.core_type<tc>, window_params = [{transform_indices = @transform_0, window_bounds = array<i64: 8, 8>}, {pipeline_mode = #tpu.pipeline_mode<synchronous>, transform_indices = @transform_1, window_bounds = array<i64: 128, 384>}, {pipeline_mode = #tpu.pipeline_mode<synchronous>, transform_indices = @transform_2, window_bounds = array<i64: 384, 128>}, {pipeline_mode = #tpu.pipeline_mode<synchronous>, transform_indices = @transform_3, window_bounds = array<i64: 1, 128>}, {pipeline_mode = #tpu.pipeline_mode<synchronous>, transform_indices = @transform_4, window_bounds = array<i64: 128, 128>}, {pipeline_mode = #tpu.pipeline_mode<synchronous>, transform_indices = @transform_5, window_bounds = array<i64: 1, 128>}, {pipeline_mode = #tpu.pipeline_mode<synchronous>, transform_indices = @transform_6, window_bounds = array<i64: 128, 128>}, {pipeline_mode = #tpu.pipeline_mode<synchronous>, transform_indices = @transform_7, window_bounds = array<i64: 1, 128>}, {transform_indices = @transform_8, window_bounds = array<i64: 8, 128>}]} {
    %c0 = arith.constant 0 : index
    %c0_0 = arith.constant 0 : index
    %0 = vector.load %arg1[%c0, %c0_0] : memref<8x8xi32, #tpu.memory_space<vmem>>, vector<8x8xi32>
    %1 = tpu.iota {dimensions = array<i32: 1>} : vector<8x128xi32>
    %cst = arith.constant 0.000000e+00 : f32
    %2 = vector.broadcast %cst : f32 to vector<8x128xf32>
    %3 = vector.extract_strided_slice %0 {offsets = [0, 0], sizes = [8, 1], strides = [1, 1]} : vector<8x8xi32> to vector<8x1xi32>
    %4 = vector.broadcast %3 : vector<8x1xi32> to vector<8x128xi32>
    %5 = arith.cmpi eq, %1, %4 : vector<8x128xi32>
    %cst_1 = arith.constant 1.250000e-01 : f32
    %cst_2 = arith.constant 0.000000e+00 : f32
    %6 = vector.broadcast %cst_1 : f32 to vector<8x128xf32>
    %7 = vector.broadcast %cst_2 : f32 to vector<8x128xf32>
    %8 = arith.select %5, %6, %7 : vector<8x128xi1>, vector<8x128xf32>
    %9 = arith.addf %2, %8 : vector<8x128xf32>
    %10 = vector.extract_strided_slice %0 {offsets = [0, 1], sizes = [8, 1], strides = [1, 1]} : vector<8x8xi32> to vector<8x1xi32>
    %11 = vector.broadcast %10 : vector<8x1xi32> to vector<8x128xi32>
    %12 = arith.cmpi eq, %1, %11 : vector<8x128xi32>
    %cst_3 = arith.constant 1.250000e-01 : f32
    %cst_4 = arith.constant 0.000000e+00 : f32
    %13 = vector.broadcast %cst_3 : f32 to vector<8x128xf32>
    %14 = vector.broadcast %cst_4 : f32 to vector<8x128xf32>
    %15 = arith.select %12, %13, %14 : vector<8x128xi1>, vector<8x128xf32>
    %16 = arith.addf %9, %15 : vector<8x128xf32>
    %17 = vector.extract_strided_slice %0 {offsets = [0, 2], sizes = [8, 1], strides = [1, 1]} : vector<8x8xi32> to vector<8x1xi32>
    %18 = vector.broadcast %17 : vector<8x1xi32> to vector<8x128xi32>
    %19 = arith.cmpi eq, %1, %18 : vector<8x128xi32>
    %cst_5 = arith.constant 1.250000e-01 : f32
    %cst_6 = arith.constant 0.000000e+00 : f32
    %20 = vector.broadcast %cst_5 : f32 to vector<8x128xf32>
    %21 = vector.broadcast %cst_6 : f32 to vector<8x128xf32>
    %22 = arith.select %19, %20, %21 : vector<8x128xi1>, vector<8x128xf32>
    %23 = arith.addf %16, %22 : vector<8x128xf32>
    %24 = vector.extract_strided_slice %0 {offsets = [0, 3], sizes = [8, 1], strides = [1, 1]} : vector<8x8xi32> to vector<8x1xi32>
    %25 = vector.broadcast %24 : vector<8x1xi32> to vector<8x128xi32>
    %26 = arith.cmpi eq, %1, %25 : vector<8x128xi32>
    %cst_7 = arith.constant 1.250000e-01 : f32
    %cst_8 = arith.constant 0.000000e+00 : f32
    %27 = vector.broadcast %cst_7 : f32 to vector<8x128xf32>
    %28 = vector.broadcast %cst_8 : f32 to vector<8x128xf32>
    %29 = arith.select %26, %27, %28 : vector<8x128xi1>, vector<8x128xf32>
    %30 = arith.addf %23, %29 : vector<8x128xf32>
    %31 = vector.extract_strided_slice %0 {offsets = [0, 4], sizes = [8, 1], strides = [1, 1]} : vector<8x8xi32> to vector<8x1xi32>
    %32 = vector.broadcast %31 : vector<8x1xi32> to vector<8x128xi32>
    %33 = arith.cmpi eq, %1, %32 : vector<8x128xi32>
    %cst_9 = arith.constant 1.250000e-01 : f32
    %cst_10 = arith.constant 0.000000e+00 : f32
    %34 = vector.broadcast %cst_9 : f32 to vector<8x128xf32>
    %35 = vector.broadcast %cst_10 : f32 to vector<8x128xf32>
    %36 = arith.select %33, %34, %35 : vector<8x128xi1>, vector<8x128xf32>
    %37 = arith.addf %30, %36 : vector<8x128xf32>
    %38 = vector.extract_strided_slice %0 {offsets = [0, 5], sizes = [8, 1], strides = [1, 1]} : vector<8x8xi32> to vector<8x1xi32>
    %39 = vector.broadcast %38 : vector<8x1xi32> to vector<8x128xi32>
    %40 = arith.cmpi eq, %1, %39 : vector<8x128xi32>
    %cst_11 = arith.constant 1.250000e-01 : f32
    %cst_12 = arith.constant 0.000000e+00 : f32
    %41 = vector.broadcast %cst_11 : f32 to vector<8x128xf32>
    %42 = vector.broadcast %cst_12 : f32 to vector<8x128xf32>
    %43 = arith.select %40, %41, %42 : vector<8x128xi1>, vector<8x128xf32>
    %44 = arith.addf %37, %43 : vector<8x128xf32>
    %45 = vector.extract_strided_slice %0 {offsets = [0, 6], sizes = [8, 1], strides = [1, 1]} : vector<8x8xi32> to vector<8x1xi32>
    %46 = vector.broadcast %45 : vector<8x1xi32> to vector<8x128xi32>
    %47 = arith.cmpi eq, %1, %46 : vector<8x128xi32>
    %cst_13 = arith.constant 1.250000e-01 : f32
    %cst_14 = arith.constant 0.000000e+00 : f32
    %48 = vector.broadcast %cst_13 : f32 to vector<8x128xf32>
    %49 = vector.broadcast %cst_14 : f32 to vector<8x128xf32>
    %50 = arith.select %47, %48, %49 : vector<8x128xi1>, vector<8x128xf32>
    %51 = arith.addf %44, %50 : vector<8x128xf32>
    %52 = vector.extract_strided_slice %0 {offsets = [0, 7], sizes = [8, 1], strides = [1, 1]} : vector<8x8xi32> to vector<8x1xi32>
    %53 = vector.broadcast %52 : vector<8x1xi32> to vector<8x128xi32>
    %54 = arith.cmpi eq, %1, %53 : vector<8x128xi32>
    %cst_15 = arith.constant 1.250000e-01 : f32
    %cst_16 = arith.constant 0.000000e+00 : f32
    %55 = vector.broadcast %cst_15 : f32 to vector<8x128xf32>
    %56 = vector.broadcast %cst_16 : f32 to vector<8x128xf32>
    %57 = arith.select %54, %55, %56 : vector<8x128xi1>, vector<8x128xf32>
    %58 = arith.addf %51, %57 : vector<8x128xf32>
    %c0_17 = arith.constant 0 : index
    %c0_18 = arith.constant 0 : index
    %59 = vector.load %arg2[%c0_17, %c0_18] : memref<128x384xf32, #tpu.memory_space<vmem>>, vector<128x384xf32>
    %cst_19 = arith.constant dense<0.000000e+00> : vector<8x384xf32>
    %60 = tpu.matmul %58, %59, %cst_19 {dimension_numbers = #tpu.dot_dimension_numbers<[1], [0], [0], [1], [0, 0, 1, 1], [], []>} : vector<8x128xf32>, vector<128x384xf32>, vector<8x384xf32> -> vector<8x384xf32>
    %c0_20 = arith.constant 0 : index
    %c0_21 = arith.constant 0 : index
    %61 = vector.load %arg3[%c0_20, %c0_21] : memref<384x128xf32, #tpu.memory_space<vmem>>, vector<384x128xf32>
    %cst_22 = arith.constant dense<0.000000e+00> : vector<8x128xf32>
    %62 = tpu.matmul %60, %61, %cst_22 {dimension_numbers = #tpu.dot_dimension_numbers<[1], [0], [0], [1], [0, 0, 1, 1], [], []>} : vector<8x384xf32>, vector<384x128xf32>, vector<8x128xf32> -> vector<8x128xf32>
    %c0_23 = arith.constant 0 : index
    %c0_24 = arith.constant 0 : index
    %63 = vector.load %arg4[%c0_23, %c0_24] : memref<1x128xf32, #tpu.memory_space<vmem>>, vector<1x128xf32>
    %64 = vector.broadcast %63 : vector<1x128xf32> to vector<8x128xf32>
    %65 = arith.addf %62, %64 : vector<8x128xf32>
    %cst_25 = arith.constant 0.000000e+00 : f32
    %66 = vector.broadcast %cst_25 : f32 to vector<8x128xf32>
    %67 = arith.maximumf %65, %66 : vector<8x128xf32>
    %c0_26 = arith.constant 0 : index
    %c0_27 = arith.constant 0 : index
    %68 = vector.load %arg5[%c0_26, %c0_27] : memref<128x128xf32, #tpu.memory_space<vmem>>, vector<128x128xf32>
    %cst_28 = arith.constant dense<0.000000e+00> : vector<8x128xf32>
    %69 = tpu.matmul %67, %68, %cst_28 {dimension_numbers = #tpu.dot_dimension_numbers<[1], [0], [0], [1], [0, 0, 1, 1], [], []>} : vector<8x128xf32>, vector<128x128xf32>, vector<8x128xf32> -> vector<8x128xf32>
    %c0_29 = arith.constant 0 : index
    %c0_30 = arith.constant 0 : index
    %70 = vector.load %arg6[%c0_29, %c0_30] : memref<1x128xf32, #tpu.memory_space<vmem>>, vector<1x128xf32>
    %71 = vector.broadcast %70 : vector<1x128xf32> to vector<8x128xf32>
    %72 = arith.addf %69, %71 : vector<8x128xf32>
    %cst_31 = arith.constant 0.000000e+00 : f32
    %73 = vector.broadcast %cst_31 : f32 to vector<8x128xf32>
    %74 = arith.maximumf %72, %73 : vector<8x128xf32>
    %c0_32 = arith.constant 0 : index
    %c0_33 = arith.constant 0 : index
    %75 = vector.load %arg7[%c0_32, %c0_33] : memref<128x128xf32, #tpu.memory_space<vmem>>, vector<128x128xf32>
    %cst_34 = arith.constant dense<0.000000e+00> : vector<8x128xf32>
    %76 = tpu.matmul %74, %75, %cst_34 {dimension_numbers = #tpu.dot_dimension_numbers<[1], [0], [0], [1], [0, 0, 1, 1], [], []>} : vector<8x128xf32>, vector<128x128xf32>, vector<8x128xf32> -> vector<8x128xf32>
    %c0_35 = arith.constant 0 : index
    %c0_36 = arith.constant 0 : index
    %77 = vector.load %arg8[%c0_35, %c0_36] : memref<1x128xf32, #tpu.memory_space<vmem>>, vector<1x128xf32>
    %78 = vector.broadcast %77 : vector<1x128xf32> to vector<8x128xf32>
    %79 = arith.addf %76, %78 : vector<8x128xf32>
    %cst_37 = arith.constant 0.000000e+00 : f32
    %80 = vector.broadcast %cst_37 : f32 to vector<8x128xf32>
    %81 = arith.subf %80, %79 : vector<8x128xf32>
    %82 = math.exp %81 : vector<8x128xf32>
    %cst_38 = arith.constant 1.000000e+00 : f32
    %83 = vector.broadcast %cst_38 : f32 to vector<8x128xf32>
    %84 = arith.addf %83, %82 : vector<8x128xf32>
    %85 = tpu.reciprocal %84 {approx = true} : vector<8x128xf32> -> vector<8x128xf32>
    %c0_39 = arith.constant 0 : index
    %c0_40 = arith.constant 0 : index
    %86 = vector.load %arg9[%c0_39, %c0_40] : memref<8x128xf32, #tpu.memory_space<vmem>>, vector<8x128xf32>
    tpu.vector_store %arg9[%c0_39, %c0_40], %85 {strides = array<i32>} : memref<8x128xf32, #tpu.memory_space<vmem>>, vector<8x128xf32>,
    return
  }
  func.func @transform_0(%arg0: i32) -> (i32, i32) {
    %c0_i32 = arith.constant 0 : i32
    %c0_i32_0 = arith.constant 0 : i32
    return %arg0, %c0_i32 : i32, i32
  }
  func.func @transform_1(%arg0: i32) -> (i32, i32) {
    %c0_i32 = arith.constant 0 : i32
    %c0_i32_0 = arith.constant 0 : i32
    %c0_i32_1 = arith.constant 0 : i32
    return %c0_i32, %c0_i32_0 : i32, i32
  }
  func.func @transform_2(%arg0: i32) -> (i32, i32) {
    %c0_i32 = arith.constant 0 : i32
    %c0_i32_0 = arith.constant 0 : i32
    %c0_i32_1 = arith.constant 0 : i32
    return %c0_i32, %c0_i32_0 : i32, i32
  }
  func.func @transform_3(%arg0: i32) -> (i32, i32) {
    %c0_i32 = arith.constant 0 : i32
    %c0_i32_0 = arith.constant 0 : i32
    %c0_i32_1 = arith.constant 0 : i32
    return %c0_i32, %c0_i32_0 : i32, i32
  }
  func.func @transform_4(%arg0: i32) -> (i32, i32) {
    %c0_i32 = arith.constant 0 : i32
    %c0_i32_0 = arith.constant 0 : i32
    %c0_i32_1 = arith.constant 0 : i32
    return %c0_i32, %c0_i32_0 : i32, i32
  }
  func.func @transform_5(%arg0: i32) -> (i32, i32) {
    %c0_i32 = arith.constant 0 : i32
    %c0_i32_0 = arith.constant 0 : i32
    %c0_i32_1 = arith.constant 0 : i32
    return %c0_i32, %c0_i32_0 : i32, i32
  }
  func.func @transform_6(%arg0: i32) -> (i32, i32) {
    %c0_i32 = arith.constant 0 : i32
    %c0_i32_0 = arith.constant 0 : i32
    %c0_i32_1 = arith.constant 0 : i32
    return %c0_i32, %c0_i32_0 : i32, i32
  }
  func.func @transform_7(%arg0: i32) -> (i32, i32) {
    %c0_i32 = arith.constant 0 : i32
    %c0_i32_0 = arith.constant 0 : i32
    %c0_i32_1 = arith.constant 0 : i32
    return %c0_i32, %c0_i32_0 : i32, i32
  }
  func.func @transform_8(%arg0: i32) -> (i32, i32) {
    %c0_i32 = arith.constant 0 : i32
    %c0_i32_0 = arith.constant 0 : i32
    return %arg0, %c0_i32 : i32, i32
  }
}

</mosaic_0001>

<llo_original>
// kernel: tpu_custom_call.1
$region0: #{tpu_custom_call.1}
  #allocation0 [shape = 'u32[]', space=smem, size = 0x4, offset = 0x4, fixed_abs, tag = 'smem constant byte address 0x4 - core index']
  #allocation1 [shape = 'u32[144,128]{1,0:T(1,128)}', space=vmem, size = 0x12000, scoped, tag = 'internal scratch']
  %s0 = inlined_call_operand.hbm [shape: s32[8,8], index: 0, kind: input, shape index: {}]
  %s1 = inlined_call_operand.hbm [shape: f32[128,384], index: 1, kind: input, shape index: {}]
  %s2 = inlined_call_operand.hbm [shape: f32[384,128], index: 2, kind: input, shape index: {}]
  %s3 = inlined_call_operand.vmem [shape: f32[1,128], index: 3, kind: input, shape index: {}]
  %s4 = inlined_call_operand.hbm [shape: f32[128,128], index: 4, kind: input, shape index: {}]
  %s5 = inlined_call_operand.vmem [shape: f32[1,128], index: 5, kind: input, shape index: {}]
  %s6 = inlined_call_operand.hbm [shape: f32[128,128], index: 6, kind: input, shape index: {}]
  %s7 = inlined_call_operand.vmem [shape: f32[1,128], index: 7, kind: input, shape index: {}]
  %s8 = inlined_call_operand.hbm [shape: f32[8,128], index: 8, kind: output, shape index: {}]
  %s9 = sld [smem:[#allocation0]]
  $region62: #{tpu_custom_call.1} parent=0
    _
  %s11 = ssub.s32 1, %s9
  %s12 = scalar_select 0, %s11, %s9
  $region1: #{tpu_custom_call.1} parent=0
    #allocation2 [shape = 'u8[4096]{0}', space=vmem, size = 0x1000, scoped, tag = 'input window, operand 0, single buffered']
    #allocation3 [shape = 's32[1]{0}', space=sflag, size = 0x4, scoped, tag = 'scoped memory for tpu_custom_call.1']
    #allocation4 [shape = 's32[1]{0}', space=sflag, size = 0x4, scoped, tag = 'scoped memory for tpu_custom_call.1']
    #allocation5 [shape = 'u8[196608]{0}', space=vmem, size = 0x30000, scoped, tag = 'input window, operand 1, single buffered']
    #allocation6 [shape = 's32[1]{0}', space=sflag, size = 0x4, scoped, tag = 'scoped memory for tpu_custom_call.1']
    #allocation7 [shape = 'u8[196608]{0}', space=vmem, size = 0x30000, scoped, tag = 'input window, operand 2, single buffered']
    #allocation8 [shape = 'u8[65536]{0}', space=vmem, size = 0x10000, scoped, tag = 'input window, operand 4, single buffered']
    #allocation9 [shape = 's32[1]{0}', space=sflag, size = 0x4, scoped, tag = 'scoped memory for tpu_custom_call.1']
    #allocation10 [shape = 'u8[65536]{0}', space=vmem, size = 0x10000, scoped, tag = 'input window, operand 6, single buffered']
    #allocation11 [shape = 'u8[4096]{0}', space=vmem, size = 0x1000, scoped, tag = 'output window, operand 0, single buffered']
    %13 = vsyncpa [#allocation3], 0
    %14 = vsyncpa [#allocation6], 0
    %15 = vsyncpa [#allocation9], 0
    %16 = vsyncpa [#allocation4], 0
    // Predicated region
    $region2: #{tpu_custom_call.1} parent=1 // pred_check
      _
    $region3: #{tpu_custom_call.1} parent=1 // pred_check_branch
      %18 = sbr.rel (0) target = $region5
    $region4: #{tpu_custom_call.1} parent=1 // pred_region
      %s20 = ssub.s32 128, 128
      %21 = vsyncadd [#allocation3], %s20
      %s23 = sshll.u32 [#allocation2], 4
      %s24 = int_to_ptr.vmem [resolvable:$true] %s23
      %26 = dma.hbm_to_vmem [thread:$0]  %s0, 128, %s24, [#allocation3]
    $region5: #{tpu_custom_call.1} parent=1 // pred_fallthru
      _
    // Predicated region
    $region6: #{tpu_custom_call.1} parent=1 // pred_check
      _
    $region7: #{tpu_custom_call.1} parent=1 // pred_check_branch
      %28 = sbr.rel (0) target = $region9
    $region8: #{tpu_custom_call.1} parent=1 // pred_region
      %s30 = ssub.s32 6144, 6144
      %31 = vsyncadd [#allocation6], %s30
      %s32 = sshll.u32 [#allocation5], 4
      %s33 = int_to_ptr.vmem [resolvable:$true] %s32
      %38 = dma.hbm_to_vmem [thread:$0]  %s1, 6144, %s33, [#allocation6], 384, 384, 24
    $region9: #{tpu_custom_call.1} parent=1 // pred_fallthru
      _
    // Predicated region
    $region10: #{tpu_custom_call.1} parent=1 // pred_check
      _
    $region11: #{tpu_custom_call.1} parent=1 // pred_check_branch
      %40 = sbr.rel (0) target = $region13
    $region12: #{tpu_custom_call.1} parent=1 // pred_region
      %s42 = ssub.s32 6144, 6144
      %43 = vsyncadd [#allocation6], %s42
      %s44 = sshll.u32 [#allocation7], 4
      %s45 = int_to_ptr.vmem [resolvable:$true] %s44
      %50 = dma.hbm_to_vmem [thread:$0]  %s2, 6144, %s45, [#allocation6], 128, 128, 8
    $region13: #{tpu_custom_call.1} parent=1 // pred_fallthru
      _
    // Predicated region
    $region14: #{tpu_custom_call.1} parent=1 // pred_check
      _
    $region15: #{tpu_custom_call.1} parent=1 // pred_check_branch
      %52 = sbr.rel (0) target = $region17
    $region16: #{tpu_custom_call.1} parent=1 // pred_region
      _
    $region17: #{tpu_custom_call.1} parent=1 // pred_fallthru
      _
    // Predicated region
    $region18: #{tpu_custom_call.1} parent=1 // pred_check
      _
    $region19: #{tpu_custom_call.1} parent=1 // pred_check_branch
      %54 = sbr.rel (0) target = $region21
    $region20: #{tpu_custom_call.1} parent=1 // pred_region
      %s56 = ssub.s32 2048, 2048
      %57 = vsyncadd [#allocation9], %s56
      %s58 = sshll.u32 [#allocation8], 4
      %s59 = int_to_ptr.vmem [resolvable:$true] %s58
      %64 = dma.hbm_to_vmem [thread:$0]  %s4, 2048, %s59, [#allocation9], 128, 128, 8
    $region21: #{tpu_custom_call.1} parent=1 // pred_fallthru
      _
    // Predicated region
    $region22: #{tpu_custom_call.1} parent=1 // pred_check
      _
    $region23: #{tpu_custom_call.1} parent=1 // pred_check_branch
      %66 = sbr.rel (0) target = $region25
    $region24: #{tpu_custom_call.1} parent=1 // pred_region
      _
    $region25: #{tpu_custom_call.1} parent=1 // pred_fallthru
      _
    // Predicated region
    $region26: #{tpu_custom_call.1} parent=1 // pred_check
      _
    $region27: #{tpu_custom_call.1} parent=1 // pred_check_branch
      %68 = sbr.rel (0) target = $region29
    $region28: #{tpu_custom_call.1} parent=1 // pred_region
      %s70 = ssub.s32 2048, 2048
      %71 = vsyncadd [#allocation9], %s70
      %s72 = sshll.u32 [#allocation10], 4
      %s73 = int_to_ptr.vmem [resolvable:$true] %s72
      %78 = dma.hbm_to_vmem [thread:$0]  %s6, 2048, %s73, [#allocation9], 128, 128, 8
    $region29: #{tpu_custom_call.1} parent=1 // pred_fallthru
      _
    // Predicated region
    $region30: #{tpu_custom_call.1} parent=1 // pred_check
      _
    $region31: #{tpu_custom_call.1} parent=1 // pred_check_branch
      %80 = sbr.rel (0) target = $region33
    $region32: #{tpu_custom_call.1} parent=1 // pred_region
      _
    $region33: #{tpu_custom_call.1} parent=1 // pred_fallthru
      _
    // Predicated region
    $region34: #{tpu_custom_call.1} parent=1 // pred_check
      _
    $region35: #{tpu_custom_call.1} parent=1 // pred_check_branch
      %82 = sbr.rel (0) target = $region37
    $region36: #{tpu_custom_call.1} parent=1 // pred_region
      %83 = dma.done [#allocation3], 128
    $region37: #{tpu_custom_call.1} parent=1 // pred_fallthru
      _
    // Predicated region
    $region38: #{tpu_custom_call.1} parent=1 // pred_check
      _
    $region39: #{tpu_custom_call.1} parent=1 // pred_check_branch
      %85 = sbr.rel (0) target = $region41
    $region40: #{tpu_custom_call.1} parent=1 // pred_region
      %86 = dma.done [#allocation6], 6144
    $region41: #{tpu_custom_call.1} parent=1 // pred_fallthru
      _
    // Predicated region
    $region42: #{tpu_custom_call.1} parent=1 // pred_check
      _
    $region43: #{tpu_custom_call.1} parent=1 // pred_check_branch
      %88 = sbr.rel (0) target = $region45
    $region44: #{tpu_custom_call.1} parent=1 // pred_region
      %89 = dma.done [#allocation6], 6144
    $region45: #{tpu_custom_call.1} parent=1 // pred_fallthru
      _
    // Predicated region
    $region46: #{tpu_custom_call.1} parent=1 // pred_check
      _
    $region47: #{tpu_custom_call.1} parent=1 // pred_check_branch
      %91 = sbr.rel (0) target = $region49
    $region48: #{tpu_custom_call.1} parent=1 // pred_region
      %92 = dma.done [#allocation9], 2048
    $region49: #{tpu_custom_call.1} parent=1 // pred_fallthru
      _
    // Predicated region
    $region50: #{tpu_custom_call.1} parent=1 // pred_check
      _
    $region51: #{tpu_custom_call.1} parent=1 // pred_check_branch
      %94 = sbr.rel (0) target = $region53
    $region52: #{tpu_custom_call.1} parent=1 // pred_region
      %95 = dma.done [#allocation9], 2048
    $region53: #{tpu_custom_call.1} parent=1 // pred_fallthru
      _
    %v96 = vld [vmem:[#allocation2] sm:$0xff]
    %v97 = vlaneseq
    %v98 = vand.u32 %v97, 127
    %99 = vset.pattern.permute.xlu0 0
    %100 = vperm.xlu0 %99, %v96
    %v101 = vpop.permute.xlu0 %100
    %vm102 = vcmp.eq.s32.totalorder %v98, %v101
    %v103 = vsel %vm102, 0.125, 0.0
    %v104 = vadd.f32 %v103, 0.0
    %105 = vset.pattern.permute.xlu0 1
    %106 = vperm.xlu0 %105, %v96
    %v107 = vpop.permute.xlu0 %106
    %vm108 = vcmp.eq.s32.totalorder %v98, %v107
    %v109 = vsel %vm108, 0.125, 0.0
    %v110 = vadd.f32 %v104, %v109
    %111 = vset.pattern.permute.xlu0 2
    %112 = vperm.xlu0 %111, %v96
    %v113 = vpop.permute.xlu0 %112
    %vm114 = vcmp.eq.s32.totalorder %v98, %v113
    %v115 = vsel %vm114, 0.125, 0.0
    %v116 = vadd.f32 %v110, %v115
    %117 = vset.pattern.permute.xlu0 3
    %118 = vperm.xlu0 %117, %v96
    %v119 = vpop.permute.xlu0 %118
    %vm120 = vcmp.eq.s32.totalorder %v98, %v119
    %v121 = vsel %vm120, 0.125, 0.0
    %v122 = vadd.f32 %v116, %v121
    %123 = vset.pattern.permute.xlu0 4
    %124 = vperm.xlu0 %123, %v96
    %v125 = vpop.permute.xlu0 %124
    %vm126 = vcmp.eq.s32.totalorder %v98, %v125
    %v127 = vsel %vm126, 0.125, 0.0
    %v128 = vadd.f32 %v122, %v127
    %129 = vset.pattern.permute.xlu0 5
    %130 = vperm.xlu0 %129, %v96
    %v131 = vpop.permute.xlu0 %130
    %vm132 = vcmp.eq.s32.totalorder %v98, %v131
    %v133 = vsel %vm132, 0.125, 0.0
    %v134 = vadd.f32 %v128, %v133
    %135 = vset.pattern.permute.xlu0 6
    %136 = vperm.xlu0 %135, %v96
    %v137 = vpop.permute.xlu0 %136
    %vm138 = vcmp.eq.s32.totalorder %v98, %v137
    %v139 = vsel %vm138, 0.125, 0.0
    %v140 = vadd.f32 %v134, %v139
    %141 = vset.pattern.permute.xlu0 7
    %142 = vperm.xlu0 %141, %v96
    %v143 = vpop.permute.xlu0 %142
    %vm144 = vcmp.eq.s32.totalorder %v98, %v143
    %v145 = vsel %vm144, 0.125, 0.0
    %v146 = vadd.f32 %v140, %v145
    %v147 = vld [vmem:[#allocation5] sm:$0xff]
    %v148 = vld [vmem:[#allocation5 + $0x8] sm:$0xff]
    %v149 = vld [vmem:[#allocation5 + $0x10] sm:$0xff]
    %v150 = vld [vmem:[#allocation5 + $0x18] sm:$0xff]
    %v151 = vld [vmem:[#allocation5 + $0x20] sm:$0xff]
    %v152 = vld [vmem:[#allocation5 + $0x28] sm:$0xff]
    %v153 = vld [vmem:[#allocation5 + $0x30] sm:$0xff]
    %v154 = vld [vmem:[#allocation5 + $0x38] sm:$0xff]
    %v155 = vld [vmem:[#allocation5 + $0x40] sm:$0xff]
    %v156 = vld [vmem:[#allocation5 + $0x48] sm:$0xff]
    %v157 = vld [vmem:[#allocation5 + $0x50] sm:$0xff]
    %v158 = vld [vmem:[#allocation5 + $0x58] sm:$0xff]
    %v159 = vld [vmem:[#allocation5 + $0x60] sm:$0xff]
    %v160 = vld [vmem:[#allocation5 + $0x68] sm:$0xff]
    %v161 = vld [vmem:[#allocation5 + $0x70] sm:$0xff]
    %v162 = vld [vmem:[#allocation5 + $0x78] sm:$0xff]
    %v163 = vld [vmem:[#allocation5 + $0x80] sm:$0xff]
    %v164 = vld [vmem:[#allocation5 + $0x88] sm:$0xff]
    %v165 = vld [vmem:[#allocation5 + $0x90] sm:$0xff]
    %v166 = vld [vmem:[#allocation5 + $0x98] sm:$0xff]
    %v167 = vld [vmem:[#allocation5 + $0xa0] sm:$0xff]
    %v168 = vld [vmem:[#allocation5 + $0xa8] sm:$0xff]
    %v169 = vld [vmem:[#allocation5 + $0xb0] sm:$0xff]
    %v170 = vld [vmem:[#allocation5 + $0xb8] sm:$0xff]
    %v171 = vld [vmem:[#allocation5 + $0xc0] sm:$0xff]
    %v172 = vld [vmem:[#allocation5 + $0xc8] sm:$0xff]
    %v173 = vld [vmem:[#allocation5 + $0xd0] sm:$0xff]
    %v174 = vld [vmem:[#allocation5 + $0xd8] sm:$0xff]
    %v175 = vld [vmem:[#allocation5 + $0xe0] sm:$0xff]
    %v176 = vld [vmem:[#allocation5 + $0xe8] sm:$0xff]
    %v177 = vld [vmem:[#allocation5 + $0xf0] sm:$0xff]
    %v178 = vld [vmem:[#allocation5 + $0xf8] sm:$0xff]
    %v179 = vld [vmem:[#allocation5 + $0x100] sm:$0xff]
    %v180 = vld [vmem:[#allocation5 + $0x108] sm:$0xff]
    %v181 = vld [vmem:[#allocation5 + $0x110] sm:$0xff]
    %v182 = vld [vmem:[#allocation5 + $0x118] sm:$0xff]
    %v183 = vld [vmem:[#allocation5 + $0x120] sm:$0xff]
    %v184 = vld [vmem:[#allocation5 + $0x128] sm:$0xff]
    %v185 = vld [vmem:[#allocation5 + $0x130] sm:$0xff]
    %v186 = vld [vmem:[#allocation5 + $0x138] sm:$0xff]
    %v187 = vld [vmem:[#allocation5 + $0x140] sm:$0xff]
    %v188 = vld [vmem:[#allocation5 + $0x148] sm:$0xff]
    %v189 = vld [vmem:[#allocation5 + $0x150] sm:$0xff]
    %v190 = vld [vmem:[#allocation5 + $0x158] sm:$0xff]
    %v191 = vld [vmem:[#allocation5 + $0x160] sm:$0xff]
    %v192 = vld [vmem:[#allocation5 + $0x168] sm:$0xff]
    %v193 = vld [vmem:[#allocation5 + $0x170] sm:$0xff]
    %v194 = vld [vmem:[#allocation5 + $0x178] sm:$0xff]
    %195 = vmatprep.subr.mxu0 %v148
    %196 = vmatpush1.msra.mxu0 %v147
    %197 = vmatprep.subr.mxu0 %v151
    %198 = vmatpush1.msra.mxu0 %v150
    %199 = vmatprep.subr.mxu0 %v154
    %200 = vmatpush1.msra.mxu0 %v153
    %201 = vmatprep.subr.mxu0 %v157
    %202 = vmatpush1.msra.mxu0 %v156
    %203 = vmatprep.subr.mxu0 %v160
    %204 = vmatpush1.msra.mxu0 %v159
    %205 = vmatprep.subr.mxu0 %v163
    %206 = vmatpush1.msra.mxu0 %v162
    %207 = vmatprep.subr.mxu0 %v166
    %208 = vmatpush1.msra.mxu0 %v165
    %209 = vmatprep.subr.mxu0 %v169
    %210 = vmatpush1.msra.mxu0 %v168
    %211 = vmatprep.subr.mxu0 %v172
    %212 = vmatpush1.msra.mxu0 %v171
    %213 = vmatprep.subr.mxu0 %v175
    %214 = vmatpush1.msra.mxu0 %v174
    %215 = vmatprep.subr.mxu0 %v178
    %216 = vmatpush1.msra.mxu0 %v177
    %217 = vmatprep.subr.mxu0 %v181
    %218 = vmatpush1.msra.mxu0 %v180
    %219 = vmatprep.subr.mxu0 %v184
    %220 = vmatpush1.msra.mxu0 %v183
    %221 = vmatprep.subr.mxu0 %v187
    %222 = vmatpush1.msra.mxu0 %v186
    %223 = vmatprep.subr.mxu0 %v190
    %224 = vmatpush1.msra.mxu0 %v189
    %225 = vmatprep.subr.mxu0 %v193
    %226 = vmatpush1.msra.mxu0 %v192
    %227 = vmatprep.subr.mxu0 0.0
    %228 = vmatpush1.msra.mxu0 0.0
    %229 = vmatprep.subr.mxu0 0.0
    %230 = vmatpush1.msra.mxu0 0.0
    %231 = vmatprep.subr.mxu0 0.0
    %232 = vmatpush1.msra.mxu0 0.0
    %233 = vmatprep.subr.mxu0 0.0
    %234 = vmatpush1.msra.mxu0 0.0
    %235 = vmatprep.subr.mxu0 0.0
    %236 = vmatpush1.msra.mxu0 0.0
    %237 = vmatprep.subr.mxu0 0.0
    %238 = vmatpush1.msra.mxu0 0.0
    %239 = vmatprep.subr.mxu0 0.0
    %240 = vmatpush1.msra.mxu0 0.0
    %241 = vmatprep.subr.mxu0 0.0
    %242 = vmatpush1.msra.mxu0 0.0
    %243 = vmatprep.subr.mxu0 0.0
    %244 = vmatpush1.msra.mxu0 0.0
    %245 = vmatprep.subr.mxu0 0.0
    %246 = vmatpush1.msra.mxu0 0.0
    %247 = vmatprep.subr.mxu0 0.0
    %248 = vmatpush1.msra.mxu0 0.0
    %249 = vmatprep.subr.mxu0 0.0
    %250 = vmatpush1.msra.mxu0 0.0
    %251 = vmatprep.subr.mxu0 0.0
    %252 = vmatpush1.msra.mxu0 0.0
    %253 = vmatprep.subr.mxu0 0.0
    %254 = vmatpush1.msra.mxu0 0.0
    %255 = vmatprep.subr.mxu0 0.0
    %256 = vmatpush1.msra.mxu0 0.0
    %257 = vmatprep.subr.mxu0 0.0
    %258 = vmatpush1.msra.mxu0 0.0
    %259 = vmatprep.mubr.f32.mxu0 0.0
    %260 = vmatmul.mubr.f32.gmra.mrb[0].mxu0 %v146
    %v261 = vpop.f32.mrb[0].mxu0
    %v262 = vadd.f32 0.0, %v261
    %v263 = vpop.f32.mrb[0].mxu0
    %v264 = vadd.f32 0.0, %v263
    %265 = vdwg.mxu0
    %266 = vmatprep.subr.mxu0 0.0
    %267 = vmatpush1.msra.mxu0 %v149
    %268 = vmatprep.subr.mxu0 0.0
    %269 = vmatpush1.msra.mxu0 %v152
    %270 = vmatprep.subr.mxu0 0.0
    %271 = vmatpush1.msra.mxu0 %v155
    %272 = vmatprep.subr.mxu0 0.0
    %273 = vmatpush1.msra.mxu0 %v158
    %274 = vmatprep.subr.mxu0 0.0
    %275 = vmatpush1.msra.mxu0 %v161
    %276 = vmatprep.subr.mxu0 0.0
    %277 = vmatpush1.msra.mxu0 %v164
    %278 = vmatprep.subr.mxu0 0.0
    %279 = vmatpush1.msra.mxu0 %v167
    %280 = vmatprep.subr.mxu0 0.0
    %281 = vmatpush1.msra.mxu0 %v170
    %282 = vmatprep.subr.mxu0 0.0
    %283 = vmatpush1.msra.mxu0 %v173
    %284 = vmatprep.subr.mxu0 0.0
    %285 = vmatpush1.msra.mxu0 %v176
    %286 = vmatprep.subr.mxu0 0.0
    %287 = vmatpush1.msra.mxu0 %v179
    %288 = vmatprep.subr.mxu0 0.0
    %289 = vmatpush1.msra.mxu0 %v182
    %290 = vmatprep.subr.mxu0 0.0
    %291 = vmatpush1.msra.mxu0 %v185
    %292 = vmatprep.subr.mxu0 0.0
    %293 = vmatpush1.msra.mxu0 %v188
    %294 = vmatprep.subr.mxu0 0.0
    %295 = vmatpush1.msra.mxu0 %v191
    %296 = vmatprep.subr.mxu0 0.0
    %297 = vmatpush1.msra.mxu0 %v194
    %298 = vmatprep.subr.mxu0 0.0
    %299 = vmatpush1.msra.mxu0 0.0
    %300 = vmatprep.subr.mxu0 0.0
    %301 = vmatpush1.msra.mxu0 0.0
    %302 = vmatprep.subr.mxu0 0.0
    %303 = vmatpush1.msra.mxu0 0.0
    %304 = vmatprep.subr.mxu0 0.0
    %305 = vmatpush1.msra.mxu0 0.0
    %306 = vmatprep.subr.mxu0 0.0
    %307 = vmatpush1.msra.mxu0 0.0
    %308 = vmatprep.subr.mxu0 0.0
    %309 = vmatpush1.msra.mxu0 0.0
    %310 = vmatprep.subr.mxu0 0.0
    %311 = vmatpush1.msra.mxu0 0.0
    %312 = vmatprep.subr.mxu0 0.0
    %313 = vmatpush1.msra.mxu0 0.0
    %314 = vmatprep.subr.mxu0 0.0
    %315 = vmatpush1.msra.mxu0 0.0
    %316 = vmatprep.subr.mxu0 0.0
    %317 = vmatpush1.msra.mxu0 0.0
    %318 = vmatprep.subr.mxu0 0.0
    %319 = vmatpush1.msra.mxu0 0.0
    %320 = vmatprep.subr.mxu0 0.0
    %321 = vmatpush1.msra.mxu0 0.0
    %322 = vmatprep.subr.mxu0 0.0
    %323 = vmatpush1.msra.mxu0 0.0
    %324 = vmatprep.subr.mxu0 0.0
    %325 = vmatpush1.msra.mxu0 0.0
    %326 = vmatprep.subr.mxu0 0.0
    %327 = vmatpush1.msra.mxu0 0.0
    %328 = vmatprep.subr.mxu0 0.0
    %329 = vmatpush1.msra.mxu0 0.0
    %330 = vmatprep.mubr.f32.mxu0 0.0
    %331 = vmatmul.mubr.f32.gmra.mrb[0].mxu0 %v146
    %v332 = vpop.f32.mrb[0].mxu0
    %v333 = vadd.f32 0.0, %v332
    %v334 = vpop.f32.mrb[0].mxu0
    %335 = vdwg.mxu0
    %v336 = vld [vmem:[#allocation7] sm:$0xff]
    %v337 = vld [vmem:[#allocation7 + $0x8] sm:$0xff]
    %v338 = vld [vmem:[#allocation7 + $0x10] sm:$0xff]
    %v339 = vld [vmem:[#allocation7 + $0x18] sm:$0xff]
    %v340 = vld [vmem:[#allocation7 + $0x20] sm:$0xff]
    %v341 = vld [vmem:[#allocation7 + $0x28] sm:$0xff]
    %v342 = vld [vmem:[#allocation7 + $0x30] sm:$0xff]
    %v343 = vld [vmem:[#allocation7 + $0x38] sm:$0xff]
    %v344 = vld [vmem:[#allocation7 + $0x40] sm:$0xff]
    %v345 = vld [vmem:[#allocation7 + $0x48] sm:$0xff]
    %v346 = vld [vmem:[#allocation7 + $0x50] sm:$0xff]
    %v347 = vld [vmem:[#allocation7 + $0x58] sm:$0xff]
    %v348 = vld [vmem:[#allocation7 + $0x60] sm:$0xff]
    %v349 = vld [vmem:[#allocation7 + $0x68] sm:$0xff]
    %v350 = vld [vmem:[#allocation7 + $0x70] sm:$0xff]
    %v351 = vld [vmem:[#allocation7 + $0x78] sm:$0xff]
    %v352 = vld [vmem:[#allocation7 + $0x80] sm:$0xff]
    %v353 = vld [vmem:[#allocation7 + $0x88] sm:$0xff]
    %v354 = vld [vmem:[#allocation7 + $0x90] sm:$0xff]
    %v355 = vld [vmem:[#allocation7 + $0x98] sm:$0xff]
    %v356 = vld [vmem:[#allocation7 + $0xa0] sm:$0xff]
    %v357 = vld [vmem:[#allocation7 + $0xa8] sm:$0xff]
    %v358 = vld [vmem:[#allocation7 + $0xb0] sm:$0xff]
    %v359 = vld [vmem:[#allocation7 + $0xb8] sm:$0xff]
    %v360 = vld [vmem:[#allocation7 + $0xc0] sm:$0xff]
    %v361 = vld [vmem:[#allocation7 + $0xc8] sm:$0xff]
    %v362 = vld [vmem:[#allocation7 + $0xd0] sm:$0xff]
    %v363 = vld [vmem:[#allocation7 + $0xd8] sm:$0xff]
    %v364 = vld [vmem:[#allocation7 + $0xe0] sm:$0xff]
    %v365 = vld [vmem:[#allocation7 + $0xe8] sm:$0xff]
    %v366 = vld [vmem:[#allocation7 + $0xf0] sm:$0xff]
    %v367 = vld [vmem:[#allocation7 + $0xf8] sm:$0xff]
    %v368 = vld [vmem:[#allocation7 + $0x100] sm:$0xff]
    %v369 = vld [vmem:[#allocation7 + $0x108] sm:$0xff]
    %v370 = vld [vmem:[#allocation7 + $0x110] sm:$0xff]
    %v371 = vld [vmem:[#allocation7 + $0x118] sm:$0xff]
    %v372 = vld [vmem:[#allocation7 + $0x120] sm:$0xff]
    %v373 = vld [vmem:[#allocation7 + $0x128] sm:$0xff]
    %v374 = vld [vmem:[#allocation7 + $0x130] sm:$0xff]
    %v375 = vld [vmem:[#allocation7 + $0x138] sm:$0xff]
    %v376 = vld [vmem:[#allocation7 + $0x140] sm:$0xff]
    %v377 = vld [vmem:[#allocation7 + $0x148] sm:$0xff]
    %v378 = vld [vmem:[#allocation7 + $0x150] sm:$0xff]
    %v379 = vld [vmem:[#allocation7 + $0x158] sm:$0xff]
    %v380 = vld [vmem:[#allocation7 + $0x160] sm:$0xff]
    %v381 = vld [vmem:[#allocation7 + $0x168] sm:$0xff]
    %v382 = vld [vmem:[#allocation7 + $0x170] sm:$0xff]
    %v383 = vld [vmem:[#allocation7 + $0x178] sm:$0xff]
    %v384 = vld [vmem:[%s3] sm:$0x1]
    %v386 = vlaneseq
    %v387 = vshrl.u32 %v386, 7
    %v388 = vsub.s32 0, %v387
    %v389 = vrot.slane %v384, %v388
    %391 = vmatprep.subr.mxu0 0.0
    %392 = vmatpush1.msra.mxu0 %v336
    %393 = vmatprep.subr.mxu0 0.0
    %394 = vmatpush1.msra.mxu0 %v337
    %395 = vmatprep.subr.mxu0 0.0
    %396 = vmatpush1.msra.mxu0 %v338
    %397 = vmatprep.subr.mxu0 0.0
    %398 = vmatpush1.msra.mxu0 %v339
    %399 = vmatprep.subr.mxu0 0.0
    %400 = vmatpush1.msra.mxu0 %v340
    %401 = vmatprep.subr.mxu0 0.0
    %402 = vmatpush1.msra.mxu0 %v341
    %403 = vmatprep.subr.mxu0 0.0
    %404 = vmatpush1.msra.mxu0 %v342
    %405 = vmatprep.subr.mxu0 0.0
    %406 = vmatpush1.msra.mxu0 %v343
    %407 = vmatprep.subr.mxu0 0.0
    %408 = vmatpush1.msra.mxu0 %v344
    %409 = vmatprep.subr.mxu0 0.0
    %410 = vmatpush1.msra.mxu0 %v345
    %411 = vmatprep.subr.mxu0 0.0
    %412 = vmatpush1.msra.mxu0 %v346
    %413 = vmatprep.subr.mxu0 0.0
    %414 = vmatpush1.msra.mxu0 %v347
    %415 = vmatprep.subr.mxu0 0.0
    %416 = vmatpush1.msra.mxu0 %v348
    %417 = vmatprep.subr.mxu0 0.0
    %418 = vmatpush1.msra.mxu0 %v349
    %419 = vmatprep.subr.mxu0 0.0
    %420 = vmatpush1.msra.mxu0 %v350
    %421 = vmatprep.subr.mxu0 0.0
    %422 = vmatpush1.msra.mxu0 %v351
    %423 = vmatprep.subr.mxu0 0.0
    %424 = vmatpush1.msra.mxu0 %v352
    %425 = vmatprep.subr.mxu0 0.0
    %426 = vmatpush1.msra.mxu0 %v353
    %427 = vmatprep.subr.mxu0 0.0
    %428 = vmatpush1.msra.mxu0 %v354
    %429 = vmatprep.subr.mxu0 0.0
    %430 = vmatpush1.msra.mxu0 %v355
    %431 = vmatprep.subr.mxu0 0.0
    %432 = vmatpush1.msra.mxu0 %v356
    %433 = vmatprep.subr.mxu0 0.0
    %434 = vmatpush1.msra.mxu0 %v357
    %435 = vmatprep.subr.mxu0 0.0
    %436 = vmatpush1.msra.mxu0 %v358
    %437 = vmatprep.subr.mxu0 0.0
    %438 = vmatpush1.msra.mxu0 %v359
    %439 = vmatprep.subr.mxu0 0.0
    %440 = vmatpush1.msra.mxu0 %v360
    %441 = vmatprep.subr.mxu0 0.0
    %442 = vmatpush1.msra.mxu0 %v361
    %443 = vmatprep.subr.mxu0 0.0
    %444 = vmatpush1.msra.mxu0 %v362
    %445 = vmatprep.subr.mxu0 0.0
    %446 = vmatpush1.msra.mxu0 %v363
    %447 = vmatprep.subr.mxu0 0.0
    %448 = vmatpush1.msra.mxu0 %v364
    %449 = vmatprep.subr.mxu0 0.0
    %450 = vmatpush1.msra.mxu0 %v365
    %451 = vmatprep.subr.mxu0 0.0
    %452 = vmatpush1.msra.mxu0 %v366
    %453 = vmatprep.subr.mxu0 0.0
    %454 = vmatpush1.msra.mxu0 %v367
    %455 = vmatprep.mubr.f32.mxu0 %v264
    %456 = vmatmul.mubr.f32.gmra.mrb[0].mxu0 %v262
    %v457 = vpop.f32.mrb[0].mxu0
    %v458 = vadd.f32 %v389, %v457
    %v459 = vpop.f32.mrb[0].mxu0
    %460 = vdwg.mxu0
    %461 = vmatprep.subr.mxu0 0.0
    %462 = vmatpush1.msra.mxu0 %v368
    %463 = vmatprep.subr.mxu0 0.0
    %464 = vmatpush1.msra.mxu0 %v369
    %465 = vmatprep.subr.mxu0 0.0
    %466 = vmatpush1.msra.mxu0 %v370
    %467 = vmatprep.subr.mxu0 0.0
    %468 = vmatpush1.msra.mxu0 %v371
    %469 = vmatprep.subr.mxu0 0.0
    %470 = vmatpush1.msra.mxu0 %v372
    %471 = vmatprep.subr.mxu0 0.0
    %472 = vmatpush1.msra.mxu0 %v373
    %473 = vmatprep.subr.mxu0 0.0
    %474 = vmatpush1.msra.mxu0 %v374
    %475 = vmatprep.subr.mxu0 0.0
    %476 = vmatpush1.msra.mxu0 %v375
    %477 = vmatprep.subr.mxu0 0.0
    %478 = vmatpush1.msra.mxu0 %v376
    %479 = vmatprep.subr.mxu0 0.0
    %480 = vmatpush1.msra.mxu0 %v377
    %481 = vmatprep.subr.mxu0 0.0
    %482 = vmatpush1.msra.mxu0 %v378
    %483 = vmatprep.subr.mxu0 0.0
    %484 = vmatpush1.msra.mxu0 %v379
    %485 = vmatprep.subr.mxu0 0.0
    %486 = vmatpush1.msra.mxu0 %v380
    %487 = vmatprep.subr.mxu0 0.0
    %488 = vmatpush1.msra.mxu0 %v381
    %489 = vmatprep.subr.mxu0 0.0
    %490 = vmatpush1.msra.mxu0 %v382
    %491 = vmatprep.subr.mxu0 0.0
    %492 = vmatpush1.msra.mxu0 %v383
    %493 = vmatprep.subr.mxu0 0.0
    %494 = vmatpush1.msra.mxu0 0.0
    %495 = vmatprep.subr.mxu0 0.0
    %496 = vmatpush1.msra.mxu0 0.0
    %497 = vmatprep.subr.mxu0 0.0
    %498 = vmatpush1.msra.mxu0 0.0
    %499 = vmatprep.subr.mxu0 0.0
    %500 = vmatpush1.msra.mxu0 0.0
    %501 = vmatprep.subr.mxu0 0.0
    %502 = vmatpush1.msra.mxu0 0.0
    %503 = vmatprep.subr.mxu0 0.0
    %504 = vmatpush1.msra.mxu0 0.0
    %505 = vmatprep.subr.mxu0 0.0
    %506 = vmatpush1.msra.mxu0 0.0
    %507 = vmatprep.subr.mxu0 0.0
    %508 = vmatpush1.msra.mxu0 0.0
    %509 = vmatprep.subr.mxu0 0.0
    %510 = vmatpush1.msra.mxu0 0.0
    %511 = vmatprep.subr.mxu0 0.0
    %512 = vmatpush1.msra.mxu0 0.0
    %513 = vmatprep.subr.mxu0 0.0
    %514 = vmatpush1.msra.mxu0 0.0
    %515 = vmatprep.subr.mxu0 0.0
    %516 = vmatpush1.msra.mxu0 0.0
    %517 = vmatprep.subr.mxu0 0.0
    %518 = vmatpush1.msra.mxu0 0.0
    %519 = vmatprep.subr.mxu0 0.0
    %520 = vmatpush1.msra.mxu0 0.0
    %521 = vmatprep.subr.mxu0 0.0
    %522 = vmatpush1.msra.mxu0 0.0
    %523 = vmatprep.subr.mxu0 0.0
    %524 = vmatpush1.msra.mxu0 0.0
    %525 = vmatprep.mubr.f32.mxu0 0.0
    %526 = vmatmul.mubr.f32.gmra.mrb[0].mxu0 %v333
    %v527 = vpop.f32.mrb[0].mxu0
    %v528 = vadd.f32 %v458, %v527
    %v529 = vpop.f32.mrb[0].mxu0
    %530 = vdwg.mxu0
    %v531 = vmax.f32 %v528, 0.0
    %v532 = vld [vmem:[#allocation8] sm:$0xff]
    %v533 = vld [vmem:[#allocation8 + $0x8] sm:$0xff]
    %v534 = vld [vmem:[#allocation8 + $0x10] sm:$0xff]
    %v535 = vld [vmem:[#allocation8 + $0x18] sm:$0xff]
    %v536 = vld [vmem:[#allocation8 + $0x20] sm:$0xff]
    %v537 = vld [vmem:[#allocation8 + $0x28] sm:$0xff]
    %v538 = vld [vmem:[#allocation8 + $0x30] sm:$0xff]
    %v539 = vld [vmem:[#allocation8 + $0x38] sm:$0xff]
    %v540 = vld [vmem:[#allocation8 + $0x40] sm:$0xff]
    %v541 = vld [vmem:[#allocation8 + $0x48] sm:$0xff]
    %v542 = vld [vmem:[#allocation8 + $0x50] sm:$0xff]
    %v543 = vld [vmem:[#allocation8 + $0x58] sm:$0xff]
    %v544 = vld [vmem:[#allocation8 + $0x60] sm:$0xff]
    %v545 = vld [vmem:[#allocation8 + $0x68] sm:$0xff]
    %v546 = vld [vmem:[#allocation8 + $0x70] sm:$0xff]
    %v547 = vld [vmem:[#allocation8 + $0x78] sm:$0xff]
    %v548 = vld [vmem:[%s5] sm:$0x1]
    %v550 = vlaneseq
    %v551 = vshrl.u32 %v550, 7
    %v552 = vsub.s32 0, %v551
    %v553 = vrot.slane %v548, %v552
    %555 = vmatprep.subr.mxu0 0.0
    %556 = vmatpush1.msra.mxu0 %v532
    %557 = vmatprep.subr.mxu0 0.0
    %558 = vmatpush1.msra.mxu0 %v533
    %559 = vmatprep.subr.mxu0 0.0
    %560 = vmatpush1.msra.mxu0 %v534
    %561 = vmatprep.subr.mxu0 0.0
    %562 = vmatpush1.msra.mxu0 %v535
    %563 = vmatprep.subr.mxu0 0.0
    %564 = vmatpush1.msra.mxu0 %v536
    %565 = vmatprep.subr.mxu0 0.0
    %566 = vmatpush1.msra.mxu0 %v537
    %567 = vmatprep.subr.mxu0 0.0
    %568 = vmatpush1.msra.mxu0 %v538
    %569 = vmatprep.subr.mxu0 0.0
    %570 = vmatpush1.msra.mxu0 %v539
    %571 = vmatprep.subr.mxu0 0.0
    %572 = vmatpush1.msra.mxu0 %v540
    %573 = vmatprep.subr.mxu0 0.0
    %574 = vmatpush1.msra.mxu0 %v541
    %575 = vmatprep.subr.mxu0 0.0
    %576 = vmatpush1.msra.mxu0 %v542
    %577 = vmatprep.subr.mxu0 0.0
    %578 = vmatpush1.msra.mxu0 %v543
    %579 = vmatprep.subr.mxu0 0.0
    %580 = vmatpush1.msra.mxu0 %v544
    %581 = vmatprep.subr.mxu0 0.0
    %582 = vmatpush1.msra.mxu0 %v545
    %583 = vmatprep.subr.mxu0 0.0
    %584 = vmatpush1.msra.mxu0 %v546
    %585 = vmatprep.subr.mxu0 0.0
    %586 = vmatpush1.msra.mxu0 %v547
    %587 = vmatprep.subr.mxu0 0.0
    %588 = vmatpush1.msra.mxu0 0.0
    %589 = vmatprep.subr.mxu0 0.0
    %590 = vmatpush1.msra.mxu0 0.0
    %591 = vmatprep.subr.mxu0 0.0
    %592 = vmatpush1.msra.mxu0 0.0
    %593 = vmatprep.subr.mxu0 0.0
    %594 = vmatpush1.msra.mxu0 0.0
    %595 = vmatprep.subr.mxu0 0.0
    %596 = vmatpush1.msra.mxu0 0.0
    %597 = vmatprep.subr.mxu0 0.0
    %598 = vmatpush1.msra.mxu0 0.0
    %599 = vmatprep.subr.mxu0 0.0
    %600 = vmatpush1.msra.mxu0 0.0
    %601 = vmatprep.subr.mxu0 0.0
    %602 = vmatpush1.msra.mxu0 0.0
    %603 = vmatprep.subr.mxu0 0.0
    %604 = vmatpush1.msra.mxu0 0.0
    %605 = vmatprep.subr.mxu0 0.0
    %606 = vmatpush1.msra.mxu0 0.0
    %607 = vmatprep.subr.mxu0 0.0
    %608 = vmatpush1.msra.mxu0 0.0
    %609 = vmatprep.subr.mxu0 0.0
    %610 = vmatpush1.msra.mxu0 0.0
    %611 = vmatprep.subr.mxu0 0.0
    %612 = vmatpush1.msra.mxu0 0.0
    %613 = vmatprep.subr.mxu0 0.0
    %614 = vmatpush1.msra.mxu0 0.0
    %615 = vmatprep.subr.mxu0 0.0
    %616 = vmatpush1.msra.mxu0 0.0
    %617 = vmatprep.subr.mxu0 0.0
    %618 = vmatpush1.msra.mxu0 0.0
    %619 = vmatprep.mubr.f32.mxu0 0.0
    %620 = vmatmul.mubr.f32.gmra.mrb[0].mxu0 %v531
    %v621 = vpop.f32.mrb[0].mxu0
    %v622 = vadd.f32 %v553, %v621
    %v623 = vpop.f32.mrb[0].mxu0
    %624 = vdwg.mxu0
    %v625 = vmax.f32 %v622, 0.0
    %v626 = vld [vmem:[#allocation10] sm:$0xff]
    %v627 = vld [vmem:[#allocation10 + $0x8] sm:$0xff]
    %v628 = vld [vmem:[#allocation10 + $0x10] sm:$0xff]
    %v629 = vld [vmem:[#allocation10 + $0x18] sm:$0xff]
    %v630 = vld [vmem:[#allocation10 + $0x20] sm:$0xff]
    %v631 = vld [vmem:[#allocation10 + $0x28] sm:$0xff]
    %v632 = vld [vmem:[#allocation10 + $0x30] sm:$0xff]
    %v633 = vld [vmem:[#allocation10 + $0x38] sm:$0xff]
    %v634 = vld [vmem:[#allocation10 + $0x40] sm:$0xff]
    %v635 = vld [vmem:[#allocation10 + $0x48] sm:$0xff]
    %v636 = vld [vmem:[#allocation10 + $0x50] sm:$0xff]
    %v637 = vld [vmem:[#allocation10 + $0x58] sm:$0xff]
    %v638 = vld [vmem:[#allocation10 + $0x60] sm:$0xff]
    %v639 = vld [vmem:[#allocation10 + $0x68] sm:$0xff]
    %v640 = vld [vmem:[#allocation10 + $0x70] sm:$0xff]
    %v641 = vld [vmem:[#allocation10 + $0x78] sm:$0xff]
    %v642 = vld [vmem:[%s7] sm:$0x1]
    %v644 = vlaneseq
    %v645 = vshrl.u32 %v644, 7
    %v646 = vsub.s32 0, %v645
    %v647 = vrot.slane %v642, %v646
    %649 = vmatprep.subr.mxu0 0.0
    %650 = vmatpush1.msra.mxu0 %v626
    %651 = vmatprep.subr.mxu0 0.0
    %652 = vmatpush1.msra.mxu0 %v627
    %653 = vmatprep.subr.mxu0 0.0
    %654 = vmatpush1.msra.mxu0 %v628
    %655 = vmatprep.subr.mxu0 0.0
    %656 = vmatpush1.msra.mxu0 %v629
    %657 = vmatprep.subr.mxu0 0.0
    %658 = vmatpush1.msra.mxu0 %v630
    %659 = vmatprep.subr.mxu0 0.0
    %660 = vmatpush1.msra.mxu0 %v631
    %661 = vmatprep.subr.mxu0 0.0
    %662 = vmatpush1.msra.mxu0 %v632
    %663 = vmatprep.subr.mxu0 0.0
    %664 = vmatpush1.msra.mxu0 %v633
    %665 = vmatprep.subr.mxu0 0.0
    %666 = vmatpush1.msra.mxu0 %v634
    %667 = vmatprep.subr.mxu0 0.0
    %668 = vmatpush1.msra.mxu0 %v635
    %669 = vmatprep.subr.mxu0 0.0
    %670 = vmatpush1.msra.mxu0 %v636
    %671 = vmatprep.subr.mxu0 0.0
    %672 = vmatpush1.msra.mxu0 %v637
    %673 = vmatprep.subr.mxu0 0.0
    %674 = vmatpush1.msra.mxu0 %v638
    %675 = vmatprep.subr.mxu0 0.0
    %676 = vmatpush1.msra.mxu0 %v639
    %677 = vmatprep.subr.mxu0 0.0
    %678 = vmatpush1.msra.mxu0 %v640
    %679 = vmatprep.subr.mxu0 0.0
    %680 = vmatpush1.msra.mxu0 %v641
    %681 = vmatprep.subr.mxu0 0.0
    %682 = vmatpush1.msra.mxu0 0.0
    %683 = vmatprep.subr.mxu0 0.0
    %684 = vmatpush1.msra.mxu0 0.0
    %685 = vmatprep.subr.mxu0 0.0
    %686 = vmatpush1.msra.mxu0 0.0
    %687 = vmatprep.subr.mxu0 0.0
    %688 = vmatpush1.msra.mxu0 0.0
    %689 = vmatprep.subr.mxu0 0.0
    %690 = vmatpush1.msra.mxu0 0.0
    %691 = vmatprep.subr.mxu0 0.0
    %692 = vmatpush1.msra.mxu0 0.0
    %693 = vmatprep.subr.mxu0 0.0
    %694 = vmatpush1.msra.mxu0 0.0
    %695 = vmatprep.subr.mxu0 0.0
    %696 = vmatpush1.msra.mxu0 0.0
    %697 = vmatprep.subr.mxu0 0.0
    %698 = vmatpush1.msra.mxu0 0.0
    %699 = vmatprep.subr.mxu0 0.0
    %700 = vmatpush1.msra.mxu0 0.0
    %701 = vmatprep.subr.mxu0 0.0
    %702 = vmatpush1.msra.mxu0 0.0
    %703 = vmatprep.subr.mxu0 0.0
    %704 = vmatpush1.msra.mxu0 0.0
    %705 = vmatprep.subr.mxu0 0.0
    %706 = vmatpush1.msra.mxu0 0.0
    %707 = vmatprep.subr.mxu0 0.0
    %708 = vmatpush1.msra.mxu0 0.0
    %709 = vmatprep.subr.mxu0 0.0
    %710 = vmatpush1.msra.mxu0 0.0
    %711 = vmatprep.subr.mxu0 0.0
    %712 = vmatpush1.msra.mxu0 0.0
    %713 = vmatprep.mubr.f32.mxu0 0.0
    %714 = vmatmul.mubr.f32.gmra.mrb[0].mxu0 %v625
    %v715 = vpop.f32.mrb[0].mxu0
    %v716 = vadd.f32 %v647, %v715
    %v717 = vpop.f32.mrb[0].mxu0
    %718 = vdwg.mxu0
    %v719 = vsub.f32 0.0, %v716
    %v720 = vmul.f32 %v719, 1.442695
    %v721 = vpow.pop %v720
    %v722 = vadd.f32 %v721, 1.0
    %v723 = vrcp.pop %v722
    %724 = vst [vmem:[#allocation11] sm:$0xff] %v723
    // Predicated region
    $region54: #{tpu_custom_call.1} parent=1 // pred_check
      _
    $region55: #{tpu_custom_call.1} parent=1 // pred_check_branch
      %726 = sbr.rel (0) target = $region57
    $region56: #{tpu_custom_call.1} parent=1 // pred_region
      %s728 = ssub.s32 128, 128
      %729 = vsyncadd [#allocation4], %s728
      %s731 = sshll.u32 [#allocation11], 4
      %s732 = int_to_ptr.vmem [resolvable:$true] %s731
      %734 = dma.vmem_to_hbm [thread:$0]  %s732, 128, %s8, [#allocation4]
    $region57: #{tpu_custom_call.1} parent=1 // pred_fallthru
      _
    // Predicated region
    $region58: #{tpu_custom_call.1} parent=1 // pred_check
      _
    $region59: #{tpu_custom_call.1} parent=1 // pred_check_branch
      %736 = sbr.rel (0) target = $region61
    $region60: #{tpu_custom_call.1} parent=1 // pred_region
      %737 = dma.done [#allocation4], 128
    $region61: #{tpu_custom_call.1} parent=1 // pred_fallthru
      _
    %738 = vsyncpa [#allocation3], 1
    %739 = vsyncpa [#allocation6], 1
    %740 = vsyncpa [#allocation9], 1
    %741 = vsyncpa [#allocation4], 1

</llo_original>
